<compile_context>
chip_gen: v6e
topology: v6e:2x2x1
jax: 0.10.0
libtpu: 0.0.40
codegen_flags: <defaults>
</compile_context>

<pallas_src>
import jax
import jax.numpy as jnp
from jax import lax
from jax.experimental import pallas as pl
from jax.experimental.pallas import tpu as pltpu


def _round_up(n, m):
    return ((n + m - 1) // m) * m


def _vmem_capacity_bytes():
    """Best-effort per-core VMEM capacity; conservative 64 MiB (v7x) fallback."""
    try:
        info = pltpu.get_tpu_info()
        cap = int(getattr(info, "vmem_capacity_bytes", 0) or 0)
        if cap > 0:
            return cap
    except Exception:
        pass
    return 64 * 1024 * 1024


def sae_kernel(x_ref,
               w1t_ref, b1_ref,
               w2_ref, b2_ref,
               w3_ref, b3_ref,
               w4_ref, b4_ref,
               o_ref):
    """One (bt, M) batch tile of the SAE forward. Weights stay VMEM-resident."""
    # fc1: contract the feature (lane) axis of x with the feature (lane) axis
    # of the lane-dense transposed weight w1t (20, M) -> (bt, 20).  Operands
    # are cast to the weight dtype (bf16 path cuts MXU passes ~3x); f32 accum.
    x = x_ref[...].astype(w1t_ref.dtype)
    h1 = jax.nn.sigmoid(
        lax.dot_general(x, w1t_ref[...],
                        dimension_numbers=(((1,), (1,)), ((), ())),
                        preferred_element_type=jnp.float32)
        + b1_ref[...])
    # Hidden layers are tiny (bt, 20)/(bt, 10); keep them fully f32 (v5e-safe).
    h2 = jax.nn.sigmoid(
        jnp.dot(h1, w2_ref[...], preferred_element_type=jnp.float32) + b2_ref[...])
    h3 = jax.nn.sigmoid(
        jnp.dot(h2, w3_ref[...], preferred_element_type=jnp.float32) + b3_ref[...])
    # fc4: (bt, 20) x (20, M) -> (bt, M), operands in the weight dtype, f32 accum.
    out = jnp.dot(h3.astype(w4_ref.dtype), w4_ref[...],
                  preferred_element_type=jnp.float32) + b4_ref[...]
    o_ref[...] = out.astype(o_ref.dtype)


def sae_forward(x, params, *, out_dtype=None, block_batch=None):
    """x: (B, M). params: w1t(20,M), w4(20,M), w2(20,10), w3(10,20), biases (1,·)."""
    B, M = x.shape
    w1t, b1 = params["w1t"], params["b1"]
    w2, b2 = params["w2"], params["b2"]
    w3, b3 = params["w3"], params["b3"]
    w4, b4 = params["w4"], params["b4"]
    assert w1t.shape == (20, M) and w4.shape == (20, M) and b4.shape == (1, M)

    out_dtype = x.dtype if out_dtype is None else jnp.dtype(out_dtype)
    x_item = x.dtype.itemsize
    out_item = jnp.dtype(out_dtype).itemsize

    # Sub-32-bit streamed tiles pack two rows per sublane -> 16-row alignment.
    row_align = 16 if min(x_item, out_item) < 4 else 8

    # Generation-aware VMEM budget: streamed x/out tiles are double-buffered,
    # grid-invariant weights stay resident (budgeted double-buffered too), plus
    # ~8 B/elem slack for the f32 fc4 accumulator and in-kernel casts.
    vmem_cap = _vmem_capacity_bytes()
    vmem_limit = min(int(vmem_cap * 0.85), 112 * 1024 * 1024)
    resident = 2 * sum(int(a.size) * a.dtype.itemsize
                       for a in (w1t, b1, w2, b2, w3, b3, w4, b4))
    stream_per_row = M * (2 * x_item + 2 * out_item + 8)
    avail = max(vmem_limit - resident - (4 << 20), row_align * stream_per_row)

    if block_batch is None:
        bt = (avail // stream_per_row) // row_align * row_align
        # >= 2 grid steps whenever possible so ("parallel",) can shard the
        # batch across both v7x TensorCores; cap at 2048 rows.
        bt = min(bt, 2048, _round_up(pl.cdiv(B, 2), row_align))
        bt = max(bt, row_align)
    else:
        bt = max(row_align, (block_batch // row_align) * row_align)
    if bt >= B:
        bt = B  # single full-extent batch block (full dims are alignment-exempt)

    grid = (pl.cdiv(B, bt),)
    const2d = lambda i: (0, 0)

    out = pl.pallas_call(
        sae_kernel,
        out_shape=jax.ShapeDtypeStruct((B, M), out_dtype),
        grid=grid,
        in_specs=[
            # Streamed per batch tile (auto double-buffered); feature dim is the
            # full (unpadded) extent so only real data is loaded.
            pl.BlockSpec((bt, M), lambda i: (i, 0)),
            # Weights/biases: full-array blocks, constant index -> VMEM-resident.
            pl.BlockSpec(w1t.shape, const2d),
            pl.BlockSpec(b1.shape, const2d),
            pl.BlockSpec(w2.shape, const2d),
            pl.BlockSpec(b2.shape, const2d),
            pl.BlockSpec(w3.shape, const2d),
            pl.BlockSpec(b3.shape, const2d),
            pl.BlockSpec(w4.shape, const2d),
            pl.BlockSpec(b4.shape, const2d),
        ],
        out_specs=pl.BlockSpec((bt, M), lambda i: (i, 0)),
        compiler_params=pltpu.CompilerParams(
            dimension_semantics=("parallel",),
            vmem_limit_bytes=int(vmem_limit)),
        cost_estimate=pl.CostEstimate(
            flops=int(2 * B * (40 * M + 400)),
            transcendentals=int(100 * B),                 # ~2 EUP ops / sigmoid
            bytes_accessed=int(B * M * (x_item + out_item) + resident // 2)),
    )(x, w1t, b1, w2, b2, w3, b3, w4, b4)
    return out


def init_params(key, nb_movies):
    """nn.Linear-style init: U(-1/sqrt(fan_in), 1/sqrt(fan_in)).
    fc1 weight stored transposed (out=20, in=M); fc4 stored (in=20, out=M)."""
    keys = jax.random.split(key, 8)

    def u(k, shape, fan_in):
        b = 1.0 / (fan_in ** 0.5)
        return jax.random.uniform(k, shape, jnp.float32, minval=-b, maxval=b)

    return {
        "w1t": u(keys[0], (20, nb_movies), nb_movies),
        "b1": u(keys[1], (1, 20), nb_movies),
        "w2": u(keys[2], (20, 10), 20),
        "b2": u(keys[3], (1, 10), 20),
        "w3": u(keys[4], (10, 20), 10),
        "b3": u(keys[5], (1, 20), 10),
        "w4": u(keys[6], (20, nb_movies), 20),
        "b4": u(keys[7], (1, nb_movies), 20),
    }


def prepare_params(params, *, weight_dtype=jnp.float32):
    """Hoisted, one-time cast of the two wide weights (fc1 / fc4) for the MXU
    path; biases / small hidden weights stay f32."""
    p = dict(params)
    p["w1t"] = params["w1t"].astype(weight_dtype)
    p["w4"] = params["w4"].astype(weight_dtype)
    return p


def sae_reference(x, p):
    sig = jax.nn.sigmoid
    h = sig(x @ p["w1t"].T + p["b1"])
    h = sig(h @ p["w2"] + p["b2"])
    h = sig(h @ p["w3"] + p["b3"])
    return h @ p["w4"] + p["b4"]


if __name__ == "__main__":
    # Deliberately awkward small shapes: M=300 (not a multiple of 128) hits the
    # ragged lane edge; B=10 (not a multiple of 8) hits the partial batch tile.
    NB_MOVIES = 300
    BATCH = 10

    key = jax.random.PRNGKey(0)
    k_r, k_m, k_p = jax.random.split(key, 3)
    ratings = jax.random.randint(k_r, (BATCH, NB_MOVIES), 0, 6).astype(jnp.float32)
    mask = (jax.random.uniform(k_m, (BATCH, NB_MOVIES)) < 0.2).astype(jnp.float32)
    x = ratings * mask

    params = init_params(k_p, NB_MOVIES)
    ref = sae_reference(x, params)

    # f32 everywhere (near-exact vs reference); exercises the 2-step partial grid.
    out = jax.block_until_ready(sae_forward(x, params))
    assert out.shape == (BATCH, NB_MOVIES)
    assert jnp.allclose(out, ref, atol=1e-3, rtol=1e-3), "f32 mismatch vs reference"

    # bf16 streamed x/out + bf16 fc1/fc4 weights (f32 accumulation and f32
    # sigmoid in-kernel); exercises the 16-row alignment path.  ~2x less HBM
    # traffic on bandwidth-bound generations (incl. v5e).
    x2 = jnp.concatenate([x, x, x[:4]], axis=0)          # deterministic, B=24
    ref2 = sae_reference(x2, params)
    params_bf16 = prepare_params(params, weight_dtype=jnp.bfloat16)
    out_bf16 = jax.block_until_ready(
        sae_forward(x2.astype(jnp.bfloat16), params_bf16, out_dtype=jnp.bfloat16))
    assert out_bf16.shape == (24, NB_MOVIES)
    assert jnp.allclose(out_bf16.astype(jnp.float32), ref2, atol=5e-2, rtol=5e-2), \
        "bf16 mismatch vs reference"

    print("KERNEL_OK")
</pallas_src>

<mosaic_0001>
module attributes {stable_mosaic.version = 11 : i64} {
  func.func @sae_kernel(%arg0: i32, %arg1: memref<8x300xf32, #tpu.memory_space<vmem>>, %arg2: memref<20x300xf32, #tpu.memory_space<vmem>>, %arg3: memref<1x20xf32, #tpu.memory_space<vmem>>, %arg4: memref<20x10xf32, #tpu.memory_space<vmem>>, %arg5: memref<1x10xf32, #tpu.memory_space<vmem>>, %arg6: memref<10x20xf32, #tpu.memory_space<vmem>>, %arg7: memref<1x20xf32, #tpu.memory_space<vmem>>, %arg8: memref<20x300xf32, #tpu.memory_space<vmem>>, %arg9: memref<1x300xf32, #tpu.memory_space<vmem>>, %arg10: memref<8x300xf32, #tpu.memory_space<vmem>>) attributes {dimension_semantics = [#tpu.dimension_semantics<parallel>], iteration_bounds = array<i64: 2>, scalar_prefetch = 0 : i64, scratch_operands = 0 : i64, tpu.core_type = #tpu.core_type<tc>, window_params = [{transform_indices = @transform_0, window_bounds = array<i64: 8, 300>}, {pipeline_mode = #tpu.pipeline_mode<synchronous>, transform_indices = @transform_1, window_bounds = array<i64: 20, 300>}, {pipeline_mode = #tpu.pipeline_mode<synchronous>, transform_indices = @transform_2, window_bounds = array<i64: 1, 20>}, {pipeline_mode = #tpu.pipeline_mode<synchronous>, transform_indices = @transform_3, window_bounds = array<i64: 20, 10>}, {pipeline_mode = #tpu.pipeline_mode<synchronous>, transform_indices = @transform_4, window_bounds = array<i64: 1, 10>}, {pipeline_mode = #tpu.pipeline_mode<synchronous>, transform_indices = @transform_5, window_bounds = array<i64: 10, 20>}, {pipeline_mode = #tpu.pipeline_mode<synchronous>, transform_indices = @transform_6, window_bounds = array<i64: 1, 20>}, {pipeline_mode = #tpu.pipeline_mode<synchronous>, transform_indices = @transform_7, window_bounds = array<i64: 20, 300>}, {pipeline_mode = #tpu.pipeline_mode<synchronous>, transform_indices = @transform_8, window_bounds = array<i64: 1, 300>}, {transform_indices = @transform_9, window_bounds = array<i64: 8, 300>}]} {
    %c0 = arith.constant 0 : index
    %c0_0 = arith.constant 0 : index
    %0 = vector.load %arg1[%c0, %c0_0] : memref<8x300xf32, #tpu.memory_space<vmem>>, vector<8x300xf32>
    %c0_1 = arith.constant 0 : index
    %c0_2 = arith.constant 0 : index
    %1 = vector.load %arg2[%c0_1, %c0_2] : memref<20x300xf32, #tpu.memory_space<vmem>>, vector<20x300xf32>
    %cst = arith.constant dense<0.000000e+00> : vector<8x20xf32>
    %2 = tpu.matmul %0, %1, %cst {dimension_numbers = #tpu.dot_dimension_numbers<[1], [1], [0], [0], [0, 0, 1, 0], [], []>} : vector<8x300xf32>, vector<20x300xf32>, vector<8x20xf32> -> vector<8x20xf32>
    %c0_3 = arith.constant 0 : index
    %c0_4 = arith.constant 0 : index
    %3 = vector.load %arg3[%c0_3, %c0_4] : memref<1x20xf32, #tpu.memory_space<vmem>>, vector<1x20xf32>
    %4 = vector.broadcast %3 : vector<1x20xf32> to vector<8x20xf32>
    %5 = arith.addf %2, %4 : vector<8x20xf32>
    %6 = arith.negf %5 : vector<8x20xf32>
    %7 = math.exp %6 : vector<8x20xf32>
    %cst_5 = arith.constant 1.000000e+00 : f32
    %8 = vector.broadcast %cst_5 : f32 to vector<8x20xf32>
    %9 = arith.addf %8, %7 : vector<8x20xf32>
    %10 = arith.divf %8, %9 : vector<8x20xf32>
    %c0_6 = arith.constant 0 : index
    %c0_7 = arith.constant 0 : index
    %11 = vector.load %arg4[%c0_6, %c0_7] : memref<20x10xf32, #tpu.memory_space<vmem>>, vector<20x10xf32>
    %cst_8 = arith.constant dense<0.000000e+00> : vector<8x10xf32>
    %12 = tpu.matmul %10, %11, %cst_8 {dimension_numbers = #tpu.dot_dimension_numbers<[1], [0], [0], [1], [0, 0, 1, 1], [], []>} : vector<8x20xf32>, vector<20x10xf32>, vector<8x10xf32> -> vector<8x10xf32>
    %c0_9 = arith.constant 0 : index
    %c0_10 = arith.constant 0 : index
    %13 = vector.load %arg5[%c0_9, %c0_10] : memref<1x10xf32, #tpu.memory_space<vmem>>, vector<1x10xf32>
    %14 = vector.broadcast %13 : vector<1x10xf32> to vector<8x10xf32>
    %15 = arith.addf %12, %14 : vector<8x10xf32>
    %16 = arith.negf %15 : vector<8x10xf32>
    %17 = math.exp %16 : vector<8x10xf32>
    %cst_11 = arith.constant 1.000000e+00 : f32
    %18 = vector.broadcast %cst_11 : f32 to vector<8x10xf32>
    %19 = arith.addf %18, %17 : vector<8x10xf32>
    %20 = arith.divf %18, %19 : vector<8x10xf32>
    %c0_12 = arith.constant 0 : index
    %c0_13 = arith.constant 0 : index
    %21 = vector.load %arg6[%c0_12, %c0_13] : memref<10x20xf32, #tpu.memory_space<vmem>>, vector<10x20xf32>
    %cst_14 = arith.constant dense<0.000000e+00> : vector<8x20xf32>
    %22 = tpu.matmul %20, %21, %cst_14 {dimension_numbers = #tpu.dot_dimension_numbers<[1], [0], [0], [1], [0, 0, 1, 1], [], []>} : vector<8x10xf32>, vector<10x20xf32>, vector<8x20xf32> -> vector<8x20xf32>
    %c0_15 = arith.constant 0 : index
    %c0_16 = arith.constant 0 : index
    %23 = vector.load %arg7[%c0_15, %c0_16] : memref<1x20xf32, #tpu.memory_space<vmem>>, vector<1x20xf32>
    %24 = vector.broadcast %23 : vector<1x20xf32> to vector<8x20xf32>
    %25 = arith.addf %22, %24 : vector<8x20xf32>
    %26 = arith.negf %25 : vector<8x20xf32>
    %27 = math.exp %26 : vector<8x20xf32>
    %cst_17 = arith.constant 1.000000e+00 : f32
    %28 = vector.broadcast %cst_17 : f32 to vector<8x20xf32>
    %29 = arith.addf %28, %27 : vector<8x20xf32>
    %30 = arith.divf %28, %29 : vector<8x20xf32>
    %c0_18 = arith.constant 0 : index
    %c0_19 = arith.constant 0 : index
    %31 = vector.load %arg8[%c0_18, %c0_19] : memref<20x300xf32, #tpu.memory_space<vmem>>, vector<20x300xf32>
    %cst_20 = arith.constant dense<0.000000e+00> : vector<8x300xf32>
    %32 = tpu.matmul %30, %31, %cst_20 {dimension_numbers = #tpu.dot_dimension_numbers<[1], [0], [0], [1], [0, 0, 1, 1], [], []>} : vector<8x20xf32>, vector<20x300xf32>, vector<8x300xf32> -> vector<8x300xf32>
    %c0_21 = arith.constant 0 : index
    %c0_22 = arith.constant 0 : index
    %33 = vector.load %arg9[%c0_21, %c0_22] : memref<1x300xf32, #tpu.memory_space<vmem>>, vector<1x300xf32>
    %34 = vector.broadcast %33 : vector<1x300xf32> to vector<8x300xf32>
    %35 = arith.addf %32, %34 : vector<8x300xf32>
    %c0_23 = arith.constant 0 : index
    %c0_24 = arith.constant 0 : index
    %36 = vector.load %arg10[%c0_23, %c0_24] : memref<8x300xf32, #tpu.memory_space<vmem>>, vector<8x300xf32>
    tpu.vector_store %arg10[%c0_23, %c0_24], %35 {strides = array<i32>} : memref<8x300xf32, #tpu.memory_space<vmem>>, vector<8x300xf32>,
    return
  }
  func.func @transform_0(%arg0: i32) -> (i32, i32) {
    %c0_i32 = arith.constant 0 : i32
    %c0_i32_0 = arith.constant 0 : i32
    return %arg0, %c0_i32 : i32, i32
  }
  func.func @transform_1(%arg0: i32) -> (i32, i32) {
    %c0_i32 = arith.constant 0 : i32
    %c0_i32_0 = arith.constant 0 : i32
    %c0_i32_1 = arith.constant 0 : i32
    return %c0_i32, %c0_i32_0 : i32, i32
  }
  func.func @transform_2(%arg0: i32) -> (i32, i32) {
    %c0_i32 = arith.constant 0 : i32
    %c0_i32_0 = arith.constant 0 : i32
    %c0_i32_1 = arith.constant 0 : i32
    return %c0_i32, %c0_i32_0 : i32, i32
  }
  func.func @transform_3(%arg0: i32) -> (i32, i32) {
    %c0_i32 = arith.constant 0 : i32
    %c0_i32_0 = arith.constant 0 : i32
    %c0_i32_1 = arith.constant 0 : i32
    return %c0_i32, %c0_i32_0 : i32, i32
  }
  func.func @transform_4(%arg0: i32) -> (i32, i32) {
    %c0_i32 = arith.constant 0 : i32
    %c0_i32_0 = arith.constant 0 : i32
    %c0_i32_1 = arith.constant 0 : i32
    return %c0_i32, %c0_i32_0 : i32, i32
  }
  func.func @transform_5(%arg0: i32) -> (i32, i32) {
    %c0_i32 = arith.constant 0 : i32
    %c0_i32_0 = arith.constant 0 : i32
    %c0_i32_1 = arith.constant 0 : i32
    return %c0_i32, %c0_i32_0 : i32, i32
  }
  func.func @transform_6(%arg0: i32) -> (i32, i32) {
    %c0_i32 = arith.constant 0 : i32
    %c0_i32_0 = arith.constant 0 : i32
    %c0_i32_1 = arith.constant 0 : i32
    return %c0_i32, %c0_i32_0 : i32, i32
  }
  func.func @transform_7(%arg0: i32) -> (i32, i32) {
    %c0_i32 = arith.constant 0 : i32
    %c0_i32_0 = arith.constant 0 : i32
    %c0_i32_1 = arith.constant 0 : i32
    return %c0_i32, %c0_i32_0 : i32, i32
  }
  func.func @transform_8(%arg0: i32) -> (i32, i32) {
    %c0_i32 = arith.constant 0 : i32
    %c0_i32_0 = arith.constant 0 : i32
    %c0_i32_1 = arith.constant 0 : i32
    return %c0_i32, %c0_i32_0 : i32, i32
  }
  func.func @transform_9(%arg0: i32) -> (i32, i32) {
    %c0_i32 = arith.constant 0 : i32
    %c0_i32_0 = arith.constant 0 : i32
    return %arg0, %c0_i32 : i32, i32
  }
}

</mosaic_0001>

<llo_original>
// kernel: tpu_custom_call.1
$region0: #{tpu_custom_call.1}
  #allocation0 [shape = 'u32[]', space=smem, size = 0x4, offset = 0x4, fixed_abs, tag = 'smem constant byte address 0x4 - core index']
  #allocation1 [shape = 'u32[144,128]{1,0:T(1,128)}', space=vmem, size = 0x12000, scoped, tag = 'internal scratch']
  %s0 = inlined_call_operand.hbm [shape: f32[10,300], index: 0, kind: input, shape index: {}]
  %s1 = inlined_call_operand.hbm [shape: f32[20,300], index: 1, kind: input, shape index: {}]
  %s2 = inlined_call_operand.vmem [shape: f32[1,20], index: 2, kind: input, shape index: {}]
  %s3 = inlined_call_operand.vmem [shape: f32[20,10], index: 3, kind: input, shape index: {}]
  %s4 = inlined_call_operand.vmem [shape: f32[1,10], index: 4, kind: input, shape index: {}]
  %s5 = inlined_call_operand.vmem [shape: f32[10,20], index: 5, kind: input, shape index: {}]
  %s6 = inlined_call_operand.vmem [shape: f32[1,20], index: 6, kind: input, shape index: {}]
  %s7 = inlined_call_operand.hbm [shape: f32[20,300], index: 7, kind: input, shape index: {}]
  %s8 = inlined_call_operand.vmem [shape: f32[1,300], index: 8, kind: input, shape index: {}]
  %s9 = inlined_call_operand.hbm [shape: f32[10,300], index: 9, kind: output, shape index: {}]
  %s10 = sld [smem:[#allocation0]]
  $region81: #{tpu_custom_call.1} parent=0
    _
  %s12 = ssub.s32 1, %s10
  %s13 = scalar_select 0, %s12, %s10
  $region1: #{tpu_custom_call.1} parent=0
    #allocation2 [shape = 'u8[24576]{0}', space=vmem, size = 0x6000, scoped, tag = 'input window, operand 0']
    #allocation3 [shape = 's32[2]{0}', space=sflag, size = 0x8, scoped, tag = 'scoped memory for tpu_custom_call.1']
    #allocation4 [shape = 's32[2]{0}', space=sflag, size = 0x8, scoped, tag = 'scoped memory for tpu_custom_call.1']
    #allocation5 [shape = 'u8[36864]{0}', space=vmem, size = 0x9000, scoped, tag = 'input window, operand 1, single buffered']
    #allocation6 [shape = 's32[1]{0}', space=sflag, size = 0x4, scoped, tag = 'scoped memory for tpu_custom_call.1']
    #allocation7 [shape = 'u8[36864]{0}', space=vmem, size = 0x9000, scoped, tag = 'input window, operand 7, single buffered']
    #allocation8 [shape = 'u8[24576]{0}', space=vmem, size = 0x6000, scoped, tag = 'output window, operand 0']
    %14 = vsyncpa [#allocation3], 0
    %s15 = scalar_lea.sflag [#allocation3], 1
    %16 = vsyncpa %s15, 0
    %17 = vsyncpa [#allocation6], 0
    %18 = vsyncpa [#allocation4], 0
    %s19 = scalar_lea.sflag [#allocation4], 1
    %20 = vsyncpa %s19, 0
    loop: start=0, step=1, limit=4
    $region2: #{tpu_custom_call.1} parent=1 // loop_pre_header
      _
    $region3: #{tpu_custom_call.1} parent=1 // loop_header
      %s22 = sphi 0, %s26
      %p23 = scmp.ge.s32.totalorder %s22, 4
      %s32 = sphi 0, %s34
      %s35 = sphi 0, %s32
      %s36 = sphi 0, %s35
      %s52 = sphi 0, %s36
      %s56 = sphi 0, %s56
      %s58 = sphi 0, %s56
      %s59 = sphi 0, %s58
      %s73 = sphi 0, %s59
      %s77 = sphi 0, %s77
      %s79 = sphi 0, %s77
      %s80 = sphi 0, %s79
      %s94 = sphi 0, %s80
      %s98 = sphi 0, %s98
      %s100 = sphi 0, %s98
      %s101 = sphi 0, %s100
      %s115 = sphi 0, %s101
      %s119 = sphi 0, %s119
      %s121 = sphi 0, %s119
      %s122 = sphi 0, %s121
      %s136 = sphi 0, %s122
      %s140 = sphi 0, %s140
      %s142 = sphi 0, %s140
      %s143 = sphi 0, %s142
      %s157 = sphi 0, %s143
      %s161 = sphi 0, %s161
      %s163 = sphi 0, %s161
      %s164 = sphi 0, %s163
      %s178 = sphi 0, %s164
      %s182 = sphi 0, %s182
      %s184 = sphi 0, %s182
      %s185 = sphi 0, %s184
      %s199 = sphi 0, %s185
      %s203 = sphi 0, %s203
      %s205 = sphi 0, %s203
      %s206 = sphi 0, %s205
      %s220 = sphi 0, %s206
      %s226 = sphi 0, %s228
      %s229 = sphi 0, %s226
      %s230 = sphi 0, %s229
      %s246 = sphi 0, %s230
    $region4: #{tpu_custom_call.1} parent=1 // loop_header_branch
      %25 = sbr.rel (%p23) target = $region8
    $region5: #{tpu_custom_call.1} parent=1 // loop_body
      %s27 = ssub.s32 %s22, 1
      %s28 = ssub.s32 %s22, 2
      %s29 = sadd.s32 %s22, 1
      %s30 = ssub.s32 %s22, %s29
      %p31 = scmp.eq.s32.totalorder %s30, 0
      %s33 = sadd.s32 %s32, 1
      %s34 = scalar_select %p31, %s32, %s33
      %p37 = pneg %p31
      %p38 = scmp.eq.s32.totalorder %s22, 1
      %p39 = por %p37, %p38
      %p40 = scmp.ne.s32.totalorder %s32, %s35
      %p41 = scmp.eq.s32.totalorder %s22, 0
      %p42 = por %p40, %p41
      %p43 = scmp.ne.s32.totalorder %s32, %s35
      %p44 = scmp.eq.s32.totalorder %s27, 1
      %p45 = por %p43, %p44
      %p46 = scmp.ne.s32.totalorder %s35, %s36
      %p47 = scmp.eq.s32.totalorder %s27, 0
      %p48 = por %p46, %p47
      %p49 = scmp.ne.s32.totalorder %s35, %s36
      %p50 = scmp.eq.s32.totalorder %s28, 1
      %p51 = por %p49, %p50
      %p53 = scmp.ne.s32.totalorder %s36, %s52
      %p54 = scmp.eq.s32.totalorder %s28, 0
      %p55 = por %p53, %p54
      %s57 = sadd.s32 %s56, 1
      %p60 = scmp.eq.s32.totalorder %s22, 1
      %p61 = scmp.ne.s32.totalorder %s56, %s58
      %p62 = scmp.eq.s32.totalorder %s22, 0
      %p63 = por %p61, %p62
      %p64 = scmp.ne.s32.totalorder %s56, %s58
      %p65 = scmp.eq.s32.totalorder %s27, 1
      %p66 = por %p64, %p65
      %p67 = scmp.ne.s32.totalorder %s58, %s59
      %p68 = scmp.eq.s32.totalorder %s27, 0
      %p69 = por %p67, %p68
      %p70 = scmp.ne.s32.totalorder %s58, %s59
      %p71 = scmp.eq.s32.totalorder %s28, 1
      %p72 = por %p70, %p71
      %p74 = scmp.ne.s32.totalorder %s59, %s73
      %p75 = scmp.eq.s32.totalorder %s28, 0
      %p76 = por %p74, %p75
      %s78 = sadd.s32 %s77, 1
      %p81 = scmp.eq.s32.totalorder %s22, 1
      %p82 = scmp.ne.s32.totalorder %s77, %s79
      %p83 = scmp.eq.s32.totalorder %s22, 0
      %p84 = por %p82, %p83
      %p85 = scmp.ne.s32.totalorder %s77, %s79
      %p86 = scmp.eq.s32.totalorder %s27, 1
      %p87 = por %p85, %p86
      %p88 = scmp.ne.s32.totalorder %s79, %s80
      %p89 = scmp.eq.s32.totalorder %s27, 0
      %p90 = por %p88, %p89
      %p91 = scmp.ne.s32.totalorder %s79, %s80
      %p92 = scmp.eq.s32.totalorder %s28, 1
      %p93 = por %p91, %p92
      %p95 = scmp.ne.s32.totalorder %s80, %s94
      %p96 = scmp.eq.s32.totalorder %s28, 0
      %p97 = por %p95, %p96
      %s99 = sadd.s32 %s98, 1
      %p102 = scmp.eq.s32.totalorder %s22, 1
      %p103 = scmp.ne.s32.totalorder %s98, %s100
      %p104 = scmp.eq.s32.totalorder %s22, 0
      %p105 = por %p103, %p104
      %p106 = scmp.ne.s32.totalorder %s98, %s100
      %p107 = scmp.eq.s32.totalorder %s27, 1
      %p108 = por %p106, %p107
      %p109 = scmp.ne.s32.totalorder %s100, %s101
      %p110 = scmp.eq.s32.totalorder %s27, 0
      %p111 = por %p109, %p110
      %p112 = scmp.ne.s32.totalorder %s100, %s101
      %p113 = scmp.eq.s32.totalorder %s28, 1
      %p114 = por %p112, %p113
      %p116 = scmp.ne.s32.totalorder %s101, %s115
      %p117 = scmp.eq.s32.totalorder %s28, 0
      %p118 = por %p116, %p117
      %s120 = sadd.s32 %s119, 1
      %p123 = scmp.eq.s32.totalorder %s22, 1
      %p124 = scmp.ne.s32.totalorder %s119, %s121
      %p125 = scmp.eq.s32.totalorder %s22, 0
      %p126 = por %p124, %p125
      %p127 = scmp.ne.s32.totalorder %s119, %s121
      %p128 = scmp.eq.s32.totalorder %s27, 1
      %p129 = por %p127, %p128
      %p130 = scmp.ne.s32.totalorder %s121, %s122
      %p131 = scmp.eq.s32.totalorder %s27, 0
      %p132 = por %p130, %p131
      %p133 = scmp.ne.s32.totalorder %s121, %s122
      %p134 = scmp.eq.s32.totalorder %s28, 1
      %p135 = por %p133, %p134
      %p137 = scmp.ne.s32.totalorder %s122, %s136
      %p138 = scmp.eq.s32.totalorder %s28, 0
      %p139 = por %p137, %p138
      %s141 = sadd.s32 %s140, 1
      %p144 = scmp.eq.s32.totalorder %s22, 1
      %p145 = scmp.ne.s32.totalorder %s140, %s142
      %p146 = scmp.eq.s32.totalorder %s22, 0
      %p147 = por %p145, %p146
      %p148 = scmp.ne.s32.totalorder %s140, %s142
      %p149 = scmp.eq.s32.totalorder %s27, 1
      %p150 = por %p148, %p149
      %p151 = scmp.ne.s32.totalorder %s142, %s143
      %p152 = scmp.eq.s32.totalorder %s27, 0
      %p153 = por %p151, %p152
      %p154 = scmp.ne.s32.totalorder %s142, %s143
      %p155 = scmp.eq.s32.totalorder %s28, 1
      %p156 = por %p154, %p155
      %p158 = scmp.ne.s32.totalorder %s143, %s157
      %p159 = scmp.eq.s32.totalorder %s28, 0
      %p160 = por %p158, %p159
      %s162 = sadd.s32 %s161, 1
      %p165 = scmp.eq.s32.totalorder %s22, 1
      %p166 = scmp.ne.s32.totalorder %s161, %s163
      %p167 = scmp.eq.s32.totalorder %s22, 0
      %p168 = por %p166, %p167
      %p169 = scmp.ne.s32.totalorder %s161, %s163
      %p170 = scmp.eq.s32.totalorder %s27, 1
      %p171 = por %p169, %p170
      %p172 = scmp.ne.s32.totalorder %s163, %s164
      %p173 = scmp.eq.s32.totalorder %s27, 0
      %p174 = por %p172, %p173
      %p175 = scmp.ne.s32.totalorder %s163, %s164
      %p176 = scmp.eq.s32.totalorder %s28, 1
      %p177 = por %p175, %p176
      %p179 = scmp.ne.s32.totalorder %s164, %s178
      %p180 = scmp.eq.s32.totalorder %s28, 0
      %p181 = por %p179, %p180
      %s183 = sadd.s32 %s182, 1
      %p186 = scmp.eq.s32.totalorder %s22, 1
      %p187 = scmp.ne.s32.totalorder %s182, %s184
      %p188 = scmp.eq.s32.totalorder %s22, 0
      %p189 = por %p187, %p188
      %p190 = scmp.ne.s32.totalorder %s182, %s184
      %p191 = scmp.eq.s32.totalorder %s27, 1
      %p192 = por %p190, %p191
      %p193 = scmp.ne.s32.totalorder %s184, %s185
      %p194 = scmp.eq.s32.totalorder %s27, 0
      %p195 = por %p193, %p194
      %p196 = scmp.ne.s32.totalorder %s184, %s185
      %p197 = scmp.eq.s32.totalorder %s28, 1
      %p198 = por %p196, %p197
      %p200 = scmp.ne.s32.totalorder %s185, %s199
      %p201 = scmp.eq.s32.totalorder %s28, 0
      %p202 = por %p200, %p201
      %s204 = sadd.s32 %s203, 1
      %p207 = scmp.eq.s32.totalorder %s22, 1
      %p208 = scmp.ne.s32.totalorder %s203, %s205
      %p209 = scmp.eq.s32.totalorder %s22, 0
      %p210 = por %p208, %p209
      %p211 = scmp.ne.s32.totalorder %s203, %s205
      %p212 = scmp.eq.s32.totalorder %s27, 1
      %p213 = por %p211, %p212
      %p214 = scmp.ne.s32.totalorder %s205, %s206
      %p215 = scmp.eq.s32.totalorder %s27, 0
      %p216 = por %p214, %p215
      %p217 = scmp.ne.s32.totalorder %s205, %s206
      %p218 = scmp.eq.s32.totalorder %s28, 1
      %p219 = por %p217, %p218
      %p221 = scmp.ne.s32.totalorder %s206, %s220
      %p222 = scmp.eq.s32.totalorder %s28, 0
      %p223 = por %p221, %p222
      %s224 = ssub.s32 %s22, %s29
      %p225 = scmp.eq.s32.totalorder %s224, 0
      %s227 = sadd.s32 %s226, 1
      %s228 = scalar_select %p225, %s226, %s227
      %p231 = pneg %p225
      %p232 = scmp.eq.s32.totalorder %s22, 1
      %p233 = por %p231, %p232
      %p234 = scmp.ne.s32.totalorder %s226, %s229
      %p235 = scmp.eq.s32.totalorder %s22, 0
      %p236 = por %p234, %p235
      %p237 = scmp.ne.s32.totalorder %s226, %s229
      %p238 = scmp.eq.s32.totalorder %s27, 1
      %p239 = por %p237, %p238
      %p240 = scmp.ne.s32.totalorder %s229, %s230
      %p241 = scmp.eq.s32.totalorder %s27, 0
      %p242 = por %p240, %p241
      %p243 = scmp.ne.s32.totalorder %s229, %s230
      %p244 = scmp.eq.s32.totalorder %s28, 1
      %p245 = por %p243, %p244
      %p247 = scmp.ne.s32.totalorder %s230, %s246
      %p248 = scmp.eq.s32.totalorder %s28, 0
      %p249 = por %p247, %p248
      %p250 = scmp.le.s32.totalorder 1, %s22
      %p251 = scmp.lt.s32.totalorder %s22, 3
      %p252 = pnand %p250, %p251
      %p253 = pneg %p252
      // Predicated region
      $region9: #{tpu_custom_call.1} parent=5 // pred_check
        _
      $region10: #{tpu_custom_call.1} parent=5 // pred_check_branch
        %255 = sbr.rel (%p252) target = $region12
      $region11: #{tpu_custom_call.1} parent=5 // pred_region
        %s256 = ssub.s32 %s22, 1
        // Predicated region
        $region13: #{tpu_custom_call.1} parent=11 // pred_check
          %p257 = pneg %p69
        $region14: #{tpu_custom_call.1} parent=11 // pred_check_branch
          %259 = sbr.rel (%p257) target = $region16
        $region15: #{tpu_custom_call.1} parent=11 // pred_region
          %s261 = ssub.s32 1152, 1152
          %262 = vsyncadd [#allocation6], %s261
          %s263 = sshll.u32 [#allocation5], 4
          %s264 = int_to_ptr.vmem [resolvable:$true] %s263
          %269 = dma.hbm_to_vmem [thread:$0]  %s1, 1152, %s264, [#allocation6], 384, 384, 24
        $region16: #{tpu_custom_call.1} parent=11 // pred_fallthru
          _
        // Predicated region
        $region17: #{tpu_custom_call.1} parent=11 // pred_check
          %p270 = pneg %p90
        $region18: #{tpu_custom_call.1} parent=11 // pred_check_branch
          %272 = sbr.rel (%p270) target = $region20
        $region19: #{tpu_custom_call.1} parent=11 // pred_region
          _
        $region20: #{tpu_custom_call.1} parent=11 // pred_fallthru
          _
        // Predicated region
        $region21: #{tpu_custom_call.1} parent=11 // pred_check
          %p273 = pneg %p111
        $region22: #{tpu_custom_call.1} parent=11 // pred_check_branch
          %275 = sbr.rel (%p273) target = $region24
        $region23: #{tpu_custom_call.1} parent=11 // pred_region
          _
        $region24: #{tpu_custom_call.1} parent=11 // pred_fallthru
          _
        // Predicated region
        $region25: #{tpu_custom_call.1} parent=11 // pred_check
          %p276 = pneg %p132
        $region26: #{tpu_custom_call.1} parent=11 // pred_check_branch
          %278 = sbr.rel (%p276) target = $region28
        $region27: #{tpu_custom_call.1} parent=11 // pred_region
          _
        $region28: #{tpu_custom_call.1} parent=11 // pred_fallthru
          _
        // Predicated region
        $region29: #{tpu_custom_call.1} parent=11 // pred_check
          %p279 = pneg %p153
        $region30: #{tpu_custom_call.1} parent=11 // pred_check_branch
          %281 = sbr.rel (%p279) target = $region32
        $region31: #{tpu_custom_call.1} parent=11 // pred_region
          _
        $region32: #{tpu_custom_call.1} parent=11 // pred_fallthru
          _
        // Predicated region
        $region33: #{tpu_custom_call.1} parent=11 // pred_check
          %p282 = pneg %p174
        $region34: #{tpu_custom_call.1} parent=11 // pred_check_branch
          %284 = sbr.rel (%p282) target = $region36
        $region35: #{tpu_custom_call.1} parent=11 // pred_region
          _
        $region36: #{tpu_custom_call.1} parent=11 // pred_fallthru
          _
        // Predicated region
        $region37: #{tpu_custom_call.1} parent=11 // pred_check
          %p285 = pneg %p195
        $region38: #{tpu_custom_call.1} parent=11 // pred_check_branch
          %287 = sbr.rel (%p285) target = $region40
        $region39: #{tpu_custom_call.1} parent=11 // pred_region
          %s289 = ssub.s32 1152, 1152
          %290 = vsyncadd [#allocation6], %s289
          %s291 = sshll.u32 [#allocation7], 4
          %s292 = int_to_ptr.vmem [resolvable:$true] %s291
          %297 = dma.hbm_to_vmem [thread:$0]  %s7, 1152, %s292, [#allocation6], 384, 384, 24
        $region40: #{tpu_custom_call.1} parent=11 // pred_fallthru
          _
        // Predicated region
        $region41: #{tpu_custom_call.1} parent=11 // pred_check
          %p298 = pneg %p216
        $region42: #{tpu_custom_call.1} parent=11 // pred_check_branch
          %300 = sbr.rel (%p298) target = $region44
        $region43: #{tpu_custom_call.1} parent=11 // pred_region
          _
        $region44: #{tpu_custom_call.1} parent=11 // pred_fallthru
          _
      $region12: #{tpu_custom_call.1} parent=5 // pred_fallthru
        _
      %p301 = scmp.lt.s32.totalorder %s22, 2
      // Predicated region
      $region45: #{tpu_custom_call.1} parent=5 // pred_check
        %p302 = pneg %p301
      $region46: #{tpu_custom_call.1} parent=5 // pred_check_branch
        %304 = sbr.rel (%p302) target = $region48
      $region47: #{tpu_custom_call.1} parent=5 // pred_region
        // Predicated region
        $region49: #{tpu_custom_call.1} parent=47 // pred_check
          %p305 = pneg %p42
        $region50: #{tpu_custom_call.1} parent=47 // pred_check_branch
          %307 = sbr.rel (%p305) target = $region52
        $region51: #{tpu_custom_call.1} parent=47 // pred_region
          %s308 = sand.u32 %s32, 1
          %s309 = scalar_lea.sflag [#allocation3], %s308
          %s310 = sand.u32 %s32, 1
          %s311 = smul.addr %s310, 24
          %s312 = scalar_lea.vmem [#allocation2], %s311
          %s314 = ssub.s32 384, 384
          %315 = vsyncadd %s309, %s314
          %s316 = smul.addr %s22, 3
          %s317 = smul.addr %s316, 128
          %s318 = scalar_lea.hbm %s0, %s317
          %s320 = sshll.u32 %s312, 4
          %s321 = int_to_ptr.vmem [resolvable:$true] %s320
          %323 = dma.hbm_to_vmem [thread:$0]  %s318, 384, %s321, %s309
        $region52: #{tpu_custom_call.1} parent=47 // pred_fallthru
          _
      $region48: #{tpu_custom_call.1} parent=5 // pred_fallthru
        _
      %p324 = scmp.le.s32.totalorder 1, %s22
      %p325 = scmp.lt.s32.totalorder %s22, 3
      %p326 = pnand %p324, %p325
      %p327 = pneg %p326
      // Predicated region
      $region53: #{tpu_custom_call.1} parent=5 // pred_check
        _
      $region54: #{tpu_custom_call.1} parent=5 // pred_check_branch
        %329 = sbr.rel (%p326) target = $region56
      $region55: #{tpu_custom_call.1} parent=5 // pred_region
        %s330 = ssub.s32 %s22, 1
        %s331 = sand.u32 %s35, 1
        %s332 = scalar_lea.sflag [#allocation3], %s331
        %s333 = sand.u32 %s35, 1
        %s334 = smul.addr %s333, 24
        %s335 = scalar_lea.vmem [#allocation2], %s334
        // Predicated region
        $region57: #{tpu_custom_call.1} parent=55 // pred_check
          %p336 = pneg %p48
        $region58: #{tpu_custom_call.1} parent=55 // pred_check_branch
          %338 = sbr.rel (%p336) target = $region60
        $region59: #{tpu_custom_call.1} parent=55 // pred_region
          %339 = dma.done %s332, 384
        $region60: #{tpu_custom_call.1} parent=55 // pred_fallthru
          _
        // Predicated region
        $region61: #{tpu_custom_call.1} parent=55 // pred_check
          %p340 = pneg %p69
        $region62: #{tpu_custom_call.1} parent=55 // pred_check_branch
          %342 = sbr.rel (%p340) target = $region64
        $region63: #{tpu_custom_call.1} parent=55 // pred_region
          %343 = dma.done [#allocation6], 1152
        $region64: #{tpu_custom_call.1} parent=55 // pred_fallthru
          _
        // Predicated region
        $region65: #{tpu_custom_call.1} parent=55 // pred_check
          %p344 = pneg %p195
        $region66: #{tpu_custom_call.1} parent=55 // pred_check_branch
          %346 = sbr.rel (%p344) target = $region68
        $region67: #{tpu_custom_call.1} parent=55 // pred_region
          %347 = dma.done [#allocation6], 1152
        $region68: #{tpu_custom_call.1} parent=55 // pred_fallthru
          _
        %s348 = sand.u32 %s35, 1
        %s349 = scalar_lea.sflag [#allocation3], %s348
        %s350 = sand.u32 %s35, 1
        %s351 = smul.addr %s350, 24
        %s352 = scalar_lea.vmem [#allocation2], %s351
        %p353 = pneg %p48
        %p354 = pneg %p45
        %p355 = pneg %p69
        %p356 = pneg %p66
        %p357 = pneg %p90
        %p358 = pneg %p87
        %p359 = pneg %p111
        %p360 = pneg %p108
        %p361 = pneg %p132
        %p362 = pneg %p129
        %p363 = pneg %p153
        %p364 = pneg %p150
        %p365 = pneg %p174
        %p366 = pneg %p171
        %p367 = pneg %p195
        %p368 = pneg %p192
        %p369 = pneg %p216
        %p370 = pneg %p213
        %p371 = pneg %p242
        %p372 = pneg %p239
        %s373 = sand.u32 %s229, 1
        %s374 = scalar_lea.sflag [#allocation4], %s373
        %s375 = sand.u32 %s229, 1
        %s376 = smul.addr %s375, 24
        %s377 = scalar_lea.vmem [#allocation8], %s376
        %v378 = vld [vmem:[%s335] sm:$0xff]
        %v379 = vld [vmem:[%s335 + $0x8] sm:$0xff]
        %v380 = vld [vmem:[%s335 + $0x10] sm:$0xff]
        %v381 = vld [vmem:[#allocation5] sm:$0xff]
        %v382 = vld [vmem:[#allocation5 + $0x8] sm:$0xff]
        %v383 = vld [vmem:[#allocation5 + $0x10] sm:$0xff]
        %v384 = vld [vmem:[#allocation5 + $0x18] sm:$0xff]
        %v385 = vld [vmem:[#allocation5 + $0x20] sm:$0xff]
        %v386 = vld [vmem:[#allocation5 + $0x28] sm:$0xff]
        %v387 = vld [vmem:[#allocation5 + $0x30] sm:$0xf]
        %v388 = vld [vmem:[#allocation5 + $0x38] sm:$0xf]
        %v389 = vld [vmem:[#allocation5 + $0x40] sm:$0xf]
        %v390 = vld [vmem:[%s2] sm:$0x1]
        %v392 = vlaneseq
        %v393 = vshrl.u32 %v392, 7
        %v394 = vsub.s32 0, %v393
        %v395 = vrot.slane %v390, %v394
        %vm397 = vcmask 359424
        %v399 = vsel %vm397, %v380, 0
        %v402 = vsel %vm397, %v383, 0
        %v405 = vsel %vm397, %v386, 0
        %v408 = vsel %vm397, %v389, 0
        %410 = vmatprep.subr.mxu0 0.0
        %411 = vmatpush1.xpose.msra.mxu0 0.0
        %412 = vmatprep.subr.mxu0 0.0
        %413 = vmatpush1.xpose.msra.mxu0 0.0
        %414 = vmatprep.subr.mxu0 0.0
        %415 = vmatpush1.xpose.msra.mxu0 0.0
        %416 = vmatprep.subr.mxu0 0.0
        %417 = vmatpush1.xpose.msra.mxu0 0.0
        %418 = vmatprep.subr.mxu0 0.0
        %419 = vmatpush1.xpose.msra.mxu0 0.0
        %420 = vmatprep.subr.mxu0 0.0
        %421 = vmatpush1.xpose.msra.mxu0 0.0
        %422 = vmatprep.subr.mxu0 0.0
        %423 = vmatpush1.xpose.msra.mxu0 0.0
        %424 = vmatprep.subr.mxu0 0.0
        %425 = vmatpush1.xpose.msra.mxu0 0.0
        %426 = vmatprep.subr.mxu0 0.0
        %427 = vmatpush1.xpose.msra.mxu0 0.0
        %428 = vmatprep.subr.mxu0 0.0
        %429 = vmatpush1.xpose.msra.mxu0 0.0
        %430 = vmatprep.subr.mxu0 0.0
        %431 = vmatpush1.xpose.msra.mxu0 0.0
        %432 = vmatprep.subr.mxu0 0.0
        %433 = vmatpush1.xpose.msra.mxu0 0.0
        %434 = vmatprep.subr.mxu0 0.0
        %435 = vmatpush1.xpose.msra.mxu0 0.0
        %436 = vmatprep.subr.mxu0 %v388
        %437 = vmatpush1.xpose.msra.mxu0 %v387
        %438 = vmatprep.subr.mxu0 %v385
        %439 = vmatpush1.xpose.msra.mxu0 %v384
        %440 = vmatprep.subr.mxu0 %v382
        %441 = vmatpush1.xpose.msra.mxu0 %v381
        %442 = vmatprep.subr.mxu0 0.0
        %443 = vmatpush2.xpose.msra.mxu0 0.0
        %444 = vmatprep.subr.mxu0 0.0
        %445 = vmatpush2.xpose.msra.mxu0 0.0
        %446 = vmatprep.subr.mxu0 0.0
        %447 = vmatpush2.xpose.msra.mxu0 0.0
        %448 = vmatprep.subr.mxu0 0.0
        %449 = vmatpush2.xpose.msra.mxu0 0.0
        %450 = vmatprep.subr.mxu0 0.0
        %451 = vmatpush2.xpose.msra.mxu0 0.0
        %452 = vmatprep.subr.mxu0 0.0
        %453 = vmatpush2.xpose.msra.mxu0 0.0
        %454 = vmatprep.subr.mxu0 0.0
        %455 = vmatpush2.xpose.msra.mxu0 0.0
        %456 = vmatprep.subr.mxu0 0.0
        %457 = vmatpush2.xpose.msra.mxu0 0.0
        %458 = vmatprep.subr.mxu0 0.0
        %459 = vmatpush2.xpose.msra.mxu0 0.0
        %460 = vmatprep.subr.mxu0 0.0
        %461 = vmatpush2.xpose.msra.mxu0 0.0
        %462 = vmatprep.subr.mxu0 0.0
        %463 = vmatpush2.xpose.msra.mxu0 0.0
        %464 = vmatprep.subr.mxu0 0.0
        %465 = vmatpush2.xpose.msra.mxu0 0.0
        %466 = vmatprep.subr.mxu0 0.0
        %467 = vmatpush2.xpose.msra.mxu0 0.0
        %468 = vmatprep.subr.mxu0 0.0
        %469 = vmatpush2.xpose.msra.mxu0 0.0
        %470 = vmatprep.subr.mxu0 0.0
        %471 = vmatpush2.xpose.msra.mxu0 0.0
        %472 = vmatprep.subr.mxu0 0.0
        %473 = vmatpush2.xpose.msra.mxu0 0.0
        %474 = vmatprep.mubr.f32.mxu0 %v379
        %475 = vmatmul.mubr.f32.gmra.mxu0 %v378
        %v476 = vpop.f32.mrf.mxu0
        %v477 = vadd.f32 %v395, %v476
        %v478 = vpop.f32.mrf.mxu0
        %479 = vdwg.mxu0
        %480 = vmatprep.subr.mxu0 0.0
        %481 = vmatpush1.xpose.msra.mxu0 0.0
        %482 = vmatprep.subr.mxu0 0.0
        %483 = vmatpush1.xpose.msra.mxu0 0.0
        %484 = vmatprep.subr.mxu0 0.0
        %485 = vmatpush1.xpose.msra.mxu0 0.0
        %486 = vmatprep.subr.mxu0 0.0
        %487 = vmatpush1.xpose.msra.mxu0 0.0
        %488 = vmatprep.subr.mxu0 0.0
        %489 = vmatpush1.xpose.msra.mxu0 0.0
        %490 = vmatprep.subr.mxu0 0.0
        %491 = vmatpush1.xpose.msra.mxu0 0.0
        %492 = vmatprep.subr.mxu0 0.0
        %493 = vmatpush1.xpose.msra.mxu0 0.0
        %494 = vmatprep.subr.mxu0 0.0
        %495 = vmatpush1.xpose.msra.mxu0 0.0
        %496 = vmatprep.subr.mxu0 0.0
        %497 = vmatpush1.xpose.msra.mxu0 0.0
        %498 = vmatprep.subr.mxu0 0.0
        %499 = vmatpush1.xpose.msra.mxu0 0.0
        %500 = vmatprep.subr.mxu0 0.0
        %501 = vmatpush1.xpose.msra.mxu0 0.0
        %502 = vmatprep.subr.mxu0 0.0
        %503 = vmatpush1.xpose.msra.mxu0 0.0
        %504 = vmatprep.subr.mxu0 0.0
        %505 = vmatpush1.xpose.msra.mxu0 0.0
        %506 = vmatprep.subr.mxu0 0.0
        %507 = vmatpush1.xpose.msra.mxu0 %v408
        %508 = vmatprep.subr.mxu0 0.0
        %509 = vmatpush1.xpose.msra.mxu0 %v405
        %510 = vmatprep.subr.mxu0 0.0
        %511 = vmatpush1.xpose.msra.mxu0 %v402
        %512 = vmatprep.subr.mxu0 0.0
        %513 = vmatpush2.xpose.msra.mxu0 0.0
        %514 = vmatprep.subr.mxu0 0.0
        %515 = vmatpush2.xpose.msra.mxu0 0.0
        %516 = vmatprep.subr.mxu0 0.0
        %517 = vmatpush2.xpose.msra.mxu0 0.0
        %518 = vmatprep.subr.mxu0 0.0
        %519 = vmatpush2.xpose.msra.mxu0 0.0
        %520 = vmatprep.subr.mxu0 0.0
        %521 = vmatpush2.xpose.msra.mxu0 0.0
        %522 = vmatprep.subr.mxu0 0.0
        %523 = vmatpush2.xpose.msra.mxu0 0.0
        %524 = vmatprep.subr.mxu0 0.0
        %525 = vmatpush2.xpose.msra.mxu0 0.0
        %526 = vmatprep.subr.mxu0 0.0
        %527 = vmatpush2.xpose.msra.mxu0 0.0
        %528 = vmatprep.subr.mxu0 0.0
        %529 = vmatpush2.xpose.msra.mxu0 0.0
        %530 = vmatprep.subr.mxu0 0.0
        %531 = vmatpush2.xpose.msra.mxu0 0.0
        %532 = vmatprep.subr.mxu0 0.0
        %533 = vmatpush2.xpose.msra.mxu0 0.0
        %534 = vmatprep.subr.mxu0 0.0
        %535 = vmatpush2.xpose.msra.mxu0 0.0
        %536 = vmatprep.subr.mxu0 0.0
        %537 = vmatpush2.xpose.msra.mxu0 0.0
        %538 = vmatprep.subr.mxu0 0.0
        %539 = vmatpush2.xpose.msra.mxu0 0.0
        %540 = vmatprep.subr.mxu0 0.0
        %541 = vmatpush2.xpose.msra.mxu0 0.0
        %542 = vmatprep.subr.mxu0 0.0
        %543 = vmatpush2.xpose.msra.mxu0 0.0
        %544 = vmatprep.mubr.f32.mxu0 0.0
        %545 = vmatmul.mubr.f32.gmra.mxu0 %v399
        %v546 = vpop.f32.mrf.mxu0
        %v547 = vadd.f32 %v477, %v546
        %v548 = vpop.f32.mrf.mxu0
        %549 = vdwg.mxu0
        %v550 = vxor.u32 %v547, 2147483648
        %v551 = vmul.f32 %v550, 1.442695
        %v552 = vpow.pop %v551
        %v553 = vadd.f32 %v552, 1.0
        %v554 = vrcp.pop %v553
        %v555 = vmul.f32 1.0, %v554
        %v556 = vld [vmem:[%s3] sm:$0xff]
        %v557 = vld [vmem:[%s3 + $0x8] sm:$0xff]
        %v558 = vld [vmem:[%s3 + $0x10] sm:$0xf]
        %v559 = vld [vmem:[%s4] sm:$0x1]
        %v561 = vlaneseq
        %v562 = vshrl.u32 %v561, 7
        %v563 = vsub.s32 0, %v562
        %v564 = vrot.slane %v559, %v563
        %vm566 = vcmask 162816
        %v568 = vsel %vm566, %v555, 0
        %vm570 = vcmask 1043456
        %v572 = vsel %vm570, %v558, 0
        %574 = vmatprep.subr.mxu0 0.0
        %575 = vmatpush1.msra.mxu0 0.0
        %576 = vmatprep.subr.mxu0 0.0
        %577 = vmatpush1.msra.mxu0 0.0
        %578 = vmatprep.subr.mxu0 0.0
        %579 = vmatpush1.msra.mxu0 0.0
        %580 = vmatprep.subr.mxu0 0.0
        %581 = vmatpush1.msra.mxu0 0.0
        %582 = vmatprep.subr.mxu0 0.0
        %583 = vmatpush1.msra.mxu0 0.0
        %584 = vmatprep.subr.mxu0 0.0
        %585 = vmatpush1.msra.mxu0 0.0
        %586 = vmatprep.subr.mxu0 0.0
        %587 = vmatpush1.msra.mxu0 0.0
        %588 = vmatprep.subr.mxu0 0.0
        %589 = vmatpush1.msra.mxu0 0.0
        %590 = vmatprep.subr.mxu0 0.0
        %591 = vmatpush1.msra.mxu0 0.0
        %592 = vmatprep.subr.mxu0 0.0
        %593 = vmatpush1.msra.mxu0 0.0
        %594 = vmatprep.subr.mxu0 0.0
        %595 = vmatpush1.msra.mxu0 0.0
        %596 = vmatprep.subr.mxu0 0.0
        %597 = vmatpush1.msra.mxu0 0.0
        %598 = vmatprep.subr.mxu0 0.0
        %599 = vmatpush1.msra.mxu0 0.0
        %600 = vmatprep.subr.mxu0 0.0
        %601 = vmatpush1.msra.mxu0 %v572
        %602 = vmatprep.subr.mxu0 0.0
        %603 = vmatpush1.msra.mxu0 %v557
        %604 = vmatprep.subr.mxu0 0.0
        %605 = vmatpush1.msra.mxu0 %v556
        %606 = vmatprep.subr.mxu0 0.0
        %607 = vmatpush2.msra.mxu0 0.0
        %608 = vmatprep.subr.mxu0 0.0
        %609 = vmatpush2.msra.mxu0 0.0
        %610 = vmatprep.subr.mxu0 0.0
        %611 = vmatpush2.msra.mxu0 0.0
        %612 = vmatprep.subr.mxu0 0.0
        %613 = vmatpush2.msra.mxu0 0.0
        %614 = vmatprep.subr.mxu0 0.0
        %615 = vmatpush2.msra.mxu0 0.0
        %616 = vmatprep.subr.mxu0 0.0
        %617 = vmatpush2.msra.mxu0 0.0
        %618 = vmatprep.subr.mxu0 0.0
        %619 = vmatpush2.msra.mxu0 0.0
        %620 = vmatprep.subr.mxu0 0.0
        %621 = vmatpush2.msra.mxu0 0.0
        %622 = vmatprep.subr.mxu0 0.0
        %623 = vmatpush2.msra.mxu0 0.0
        %624 = vmatprep.subr.mxu0 0.0
        %625 = vmatpush2.msra.mxu0 0.0
        %626 = vmatprep.subr.mxu0 0.0
        %627 = vmatpush2.msra.mxu0 0.0
        %628 = vmatprep.subr.mxu0 0.0
        %629 = vmatpush2.msra.mxu0 0.0
        %630 = vmatprep.subr.mxu0 0.0
        %631 = vmatpush2.msra.mxu0 0.0
        %632 = vmatprep.subr.mxu0 0.0
        %633 = vmatpush2.msra.mxu0 0.0
        %634 = vmatprep.subr.mxu0 0.0
        %635 = vmatpush2.msra.mxu0 0.0
        %636 = vmatprep.subr.mxu0 0.0
        %637 = vmatpush2.msra.mxu0 0.0
        %638 = vmatprep.mubr.f32.mxu0 0.0
        %639 = vmatmul.mubr.f32.gmra.mxu0 %v568
        %v640 = vpop.f32.mrf.mxu0
        %v641 = vadd.f32 %v564, %v640
        %v642 = vpop.f32.mrf.mxu0
        %643 = vdwg.mxu0
        %v644 = vxor.u32 %v641, 2147483648
        %v645 = vmul.f32 %v644, 1.442695
        %v646 = vpow.pop %v645
        %v647 = vadd.f32 %v646, 1.0
        %v648 = vrcp.pop %v647
        %v649 = vmul.f32 1.0, %v648
        %v650 = vld [vmem:[%s5] sm:$0xff]
        %v651 = vld [vmem:[%s5 + $0x8] sm:$0x3]
        %v652 = vld [vmem:[%s6] sm:$0x1]
        %v654 = vlaneseq
        %v655 = vshrl.u32 %v654, 7
        %v656 = vsub.s32 0, %v655
        %v657 = vrot.slane %v652, %v656
        %vm659 = vcmask 80896
        %v661 = vsel %vm659, %v649, 0
        %vm663 = vcmask 1041408
        %v665 = vsel %vm663, %v651, 0
        %667 = vmatprep.subr.mxu0 0.0
        %668 = vmatpush1.msra.mxu0 0.0
        %669 = vmatprep.subr.mxu0 0.0
        %670 = vmatpush1.msra.mxu0 0.0
        %671 = vmatprep.subr.mxu0 0.0
        %672 = vmatpush1.msra.mxu0 0.0
        %673 = vmatprep.subr.mxu0 0.0
        %674 = vmatpush1.msra.mxu0 0.0
        %675 = vmatprep.subr.mxu0 0.0
        %676 = vmatpush1.msra.mxu0 0.0
        %677 = vmatprep.subr.mxu0 0.0
        %678 = vmatpush1.msra.mxu0 0.0
        %679 = vmatprep.subr.mxu0 0.0
        %680 = vmatpush1.msra.mxu0 0.0
        %681 = vmatprep.subr.mxu0 0.0
        %682 = vmatpush1.msra.mxu0 0.0
        %683 = vmatprep.subr.mxu0 0.0
        %684 = vmatpush1.msra.mxu0 0.0
        %685 = vmatprep.subr.mxu0 0.0
        %686 = vmatpush1.msra.mxu0 0.0
        %687 = vmatprep.subr.mxu0 0.0
        %688 = vmatpush1.msra.mxu0 0.0
        %689 = vmatprep.subr.mxu0 0.0
        %690 = vmatpush1.msra.mxu0 0.0
        %691 = vmatprep.subr.mxu0 0.0
        %692 = vmatpush1.msra.mxu0 0.0
        %693 = vmatprep.subr.mxu0 0.0
        %694 = vmatpush1.msra.mxu0 0.0
        %695 = vmatprep.subr.mxu0 0.0
        %696 = vmatpush1.msra.mxu0 %v665
        %697 = vmatprep.subr.mxu0 0.0
        %698 = vmatpush1.msra.mxu0 %v650
        %699 = vmatprep.subr.mxu0 0.0
        %700 = vmatpush2.msra.mxu0 0.0
        %701 = vmatprep.subr.mxu0 0.0
        %702 = vmatpush2.msra.mxu0 0.0
        %703 = vmatprep.subr.mxu0 0.0
        %704 = vmatpush2.msra.mxu0 0.0
        %705 = vmatprep.subr.mxu0 0.0
        %706 = vmatpush2.msra.mxu0 0.0
        %707 = vmatprep.subr.mxu0 0.0
        %708 = vmatpush2.msra.mxu0 0.0
        %709 = vmatprep.subr.mxu0 0.0
        %710 = vmatpush2.msra.mxu0 0.0
        %711 = vmatprep.subr.mxu0 0.0
        %712 = vmatpush2.msra.mxu0 0.0
        %713 = vmatprep.subr.mxu0 0.0
        %714 = vmatpush2.msra.mxu0 0.0
        %715 = vmatprep.subr.mxu0 0.0
        %716 = vmatpush2.msra.mxu0 0.0
        %717 = vmatprep.subr.mxu0 0.0
        %718 = vmatpush2.msra.mxu0 0.0
        %719 = vmatprep.subr.mxu0 0.0
        %720 = vmatpush2.msra.mxu0 0.0
        %721 = vmatprep.subr.mxu0 0.0
        %722 = vmatpush2.msra.mxu0 0.0
        %723 = vmatprep.subr.mxu0 0.0
        %724 = vmatpush2.msra.mxu0 0.0
        %725 = vmatprep.subr.mxu0 0.0
        %726 = vmatpush2.msra.mxu0 0.0
        %727 = vmatprep.subr.mxu0 0.0
        %728 = vmatpush2.msra.mxu0 0.0
        %729 = vmatprep.subr.mxu0 0.0
        %730 = vmatpush2.msra.mxu0 0.0
        %731 = vmatprep.mubr.f32.mxu0 0.0
        %732 = vmatmul.mubr.f32.gmra.mxu0 %v661
        %v733 = vpop.f32.mrf.mxu0
        %v734 = vadd.f32 %v657, %v733
        %v735 = vpop.f32.mrf.mxu0
        %736 = vdwg.mxu0
        %v737 = vxor.u32 %v734, 2147483648
        %v738 = vmul.f32 %v737, 1.442695
        %v739 = vpow.pop %v738
        %v740 = vadd.f32 %v739, 1.0
        %v741 = vrcp.pop %v740
        %v742 = vmul.f32 1.0, %v741
        %v743 = vld [vmem:[#allocation7] sm:$0xff]
        %v744 = vld [vmem:[#allocation7 + $0x8] sm:$0xff]
        %v745 = vld [vmem:[#allocation7 + $0x10] sm:$0xff]
        %v746 = vld [vmem:[#allocation7 + $0x18] sm:$0xff]
        %v747 = vld [vmem:[#allocation7 + $0x20] sm:$0xff]
        %v748 = vld [vmem:[#allocation7 + $0x28] sm:$0xff]
        %v749 = vld [vmem:[#allocation7 + $0x30] sm:$0xf]
        %v750 = vld [vmem:[#allocation7 + $0x38] sm:$0xf]
        %v751 = vld [vmem:[#allocation7 + $0x40] sm:$0xf]
        %v752 = vld [vmem:[%s8] sm:$0x7]
        %v754 = vlaneseq
        %v755 = vshrl.u32 %v754, 7
        %v756 = vsub.s32 0, %v755
        %v757 = vrot.slane %v752, %v756
        %v758 = vlaneseq
        %v759 = vshrl.u32 %v758, 7
        %v760 = vsub.s32 1, %v759
        %v761 = vrot.slane %v752, %v760
        %v762 = vlaneseq
        %v763 = vshrl.u32 %v762, 7
        %v764 = vsub.s32 2, %v763
        %v765 = vrot.slane %v752, %v764
        %v770 = vsel %vm566, %v742, 0
        %v773 = vsel %vm570, %v749, 0
        %v776 = vsel %vm570, %v750, 0
        %v779 = vsel %vm570, %v751, 0
        %781 = vmatprep.subr.mxu0 0.0
        %782 = vmatpush1.msra.mxu0 0.0
        %783 = vmatprep.subr.mxu0 0.0
        %784 = vmatpush1.msra.mxu0 0.0
        %785 = vmatprep.subr.mxu0 0.0
        %786 = vmatpush1.msra.mxu0 0.0
        %787 = vmatprep.subr.mxu0 0.0
        %788 = vmatpush1.msra.mxu0 0.0
        %789 = vmatprep.subr.mxu0 0.0
        %790 = vmatpush1.msra.mxu0 0.0
        %791 = vmatprep.subr.mxu0 0.0
        %792 = vmatpush1.msra.mxu0 0.0
        %793 = vmatprep.subr.mxu0 0.0
        %794 = vmatpush1.msra.mxu0 0.0
        %795 = vmatprep.subr.mxu0 0.0
        %796 = vmatpush1.msra.mxu0 0.0
        %797 = vmatprep.subr.mxu0 0.0
        %798 = vmatpush1.msra.mxu0 0.0
        %799 = vmatprep.subr.mxu0 0.0
        %800 = vmatpush1.msra.mxu0 0.0
        %801 = vmatprep.subr.mxu0 0.0
        %802 = vmatpush1.msra.mxu0 0.0
        %803 = vmatprep.subr.mxu0 0.0
        %804 = vmatpush1.msra.mxu0 0.0
        %805 = vmatprep.subr.mxu0 0.0
        %806 = vmatpush1.msra.mxu0 0.0
        %807 = vmatprep.subr.mxu0 %v776
        %808 = vmatpush1.msra.mxu0 %v773
        %809 = vmatprep.subr.mxu0 %v747
        %810 = vmatpush1.msra.mxu0 %v746
        %811 = vmatprep.subr.mxu0 %v744
        %812 = vmatpush1.msra.mxu0 %v743
        %813 = vmatprep.subr.mxu0 0.0
        %814 = vmatpush2.msra.mxu0 0.0
        %815 = vmatprep.subr.mxu0 0.0
        %816 = vmatpush2.msra.mxu0 0.0
        %817 = vmatprep.subr.mxu0 0.0
        %818 = vmatpush2.msra.mxu0 0.0
        %819 = vmatprep.subr.mxu0 0.0
        %820 = vmatpush2.msra.mxu0 0.0
        %821 = vmatprep.subr.mxu0 0.0
        %822 = vmatpush2.msra.mxu0 0.0
        %823 = vmatprep.subr.mxu0 0.0
        %824 = vmatpush2.msra.mxu0 0.0
        %825 = vmatprep.subr.mxu0 0.0
        %826 = vmatpush2.msra.mxu0 0.0
        %827 = vmatprep.subr.mxu0 0.0
        %828 = vmatpush2.msra.mxu0 0.0
        %829 = vmatprep.subr.mxu0 0.0
        %830 = vmatpush2.msra.mxu0 0.0
        %831 = vmatprep.subr.mxu0 0.0
        %832 = vmatpush2.msra.mxu0 0.0
        %833 = vmatprep.subr.mxu0 0.0
        %834 = vmatpush2.msra.mxu0 0.0
        %835 = vmatprep.subr.mxu0 0.0
        %836 = vmatpush2.msra.mxu0 0.0
        %837 = vmatprep.subr.mxu0 0.0
        %838 = vmatpush2.msra.mxu0 0.0
        %839 = vmatprep.subr.mxu0 0.0
        %840 = vmatpush2.msra.mxu0 0.0
        %841 = vmatprep.subr.mxu0 0.0
        %842 = vmatpush2.msra.mxu0 0.0
        %843 = vmatprep.subr.mxu0 0.0
        %844 = vmatpush2.msra.mxu0 0.0
        %845 = vmatprep.mubr.f32.mxu0 0.0
        %846 = vmatmul.mubr.f32.gmra.mxu0 %v770
        %v847 = vpop.f32.mrf.mxu0
        %v848 = vadd.f32 %v757, %v847
        %v849 = vpop.f32.mrf.mxu0
        %v850 = vadd.f32 %v761, %v849
        %851 = vdwg.mxu0
        %852 = vmatprep.subr.mxu0 0.0
        %853 = vmatpush1.msra.mxu0 0.0
        %854 = vmatprep.subr.mxu0 0.0
        %855 = vmatpush1.msra.mxu0 0.0
        %856 = vmatprep.subr.mxu0 0.0
        %857 = vmatpush1.msra.mxu0 0.0
        %858 = vmatprep.subr.mxu0 0.0
        %859 = vmatpush1.msra.mxu0 0.0
        %860 = vmatprep.subr.mxu0 0.0
        %861 = vmatpush1.msra.mxu0 0.0
        %862 = vmatprep.subr.mxu0 0.0
        %863 = vmatpush1.msra.mxu0 0.0
        %864 = vmatprep.subr.mxu0 0.0
        %865 = vmatpush1.msra.mxu0 0.0
        %866 = vmatprep.subr.mxu0 0.0
        %867 = vmatpush1.msra.mxu0 0.0
        %868 = vmatprep.subr.mxu0 0.0
        %869 = vmatpush1.msra.mxu0 0.0
        %870 = vmatprep.subr.mxu0 0.0
        %871 = vmatpush1.msra.mxu0 0.0
        %872 = vmatprep.subr.mxu0 0.0
        %873 = vmatpush1.msra.mxu0 0.0
        %874 = vmatprep.subr.mxu0 0.0
        %875 = vmatpush1.msra.mxu0 0.0
        %876 = vmatprep.subr.mxu0 0.0
        %877 = vmatpush1.msra.mxu0 0.0
        %878 = vmatprep.subr.mxu0 0.0
        %879 = vmatpush1.msra.mxu0 %v779
        %880 = vmatprep.subr.mxu0 0.0
        %881 = vmatpush1.msra.mxu0 %v748
        %882 = vmatprep.subr.mxu0 0.0
        %883 = vmatpush1.msra.mxu0 %v745
        %884 = vmatprep.subr.mxu0 0.0
        %885 = vmatpush2.msra.mxu0 0.0
        %886 = vmatprep.subr.mxu0 0.0
        %887 = vmatpush2.msra.mxu0 0.0
        %888 = vmatprep.subr.mxu0 0.0
        %889 = vmatpush2.msra.mxu0 0.0
        %890 = vmatprep.subr.mxu0 0.0
        %891 = vmatpush2.msra.mxu0 0.0
        %892 = vmatprep.subr.mxu0 0.0
        %893 = vmatpush2.msra.mxu0 0.0
        %894 = vmatprep.subr.mxu0 0.0
        %895 = vmatpush2.msra.mxu0 0.0
        %896 = vmatprep.subr.mxu0 0.0
        %897 = vmatpush2.msra.mxu0 0.0
        %898 = vmatprep.subr.mxu0 0.0
        %899 = vmatpush2.msra.mxu0 0.0
        %900 = vmatprep.subr.mxu0 0.0
        %901 = vmatpush2.msra.mxu0 0.0
        %902 = vmatprep.subr.mxu0 0.0
        %903 = vmatpush2.msra.mxu0 0.0
        %904 = vmatprep.subr.mxu0 0.0
        %905 = vmatpush2.msra.mxu0 0.0
        %906 = vmatprep.subr.mxu0 0.0
        %907 = vmatpush2.msra.mxu0 0.0
        %908 = vmatprep.subr.mxu0 0.0
        %909 = vmatpush2.msra.mxu0 0.0
        %910 = vmatprep.subr.mxu0 0.0
        %911 = vmatpush2.msra.mxu0 0.0
        %912 = vmatprep.subr.mxu0 0.0
        %913 = vmatpush2.msra.mxu0 0.0
        %914 = vmatprep.subr.mxu0 0.0
        %915 = vmatpush2.msra.mxu0 0.0
        %916 = vmatprep.mubr.f32.mxu0 0.0
        %917 = vmatmul.mubr.f32.gmra.mxu0 %v770
        %v918 = vpop.f32.mrf.mxu0
        %v919 = vadd.f32 %v765, %v918
        %v920 = vpop.f32.mrf.mxu0
        %921 = vdwg.mxu0
        %922 = vst [vmem:[%s377] sm:$0xff] %v848
        %923 = vst [vmem:[%s377 + $0x8] sm:$0xff] %v850
        %924 = vst.msk [vmem:[%s377 + $0x10] sm:$0xff] %vm397, %v919
        %s925 = sand.u32 %s229, 1
        %s926 = scalar_lea.sflag [#allocation4], %s925
        %s927 = sand.u32 %s229, 1
        %s928 = smul.addr %s927, 24
        %s929 = scalar_lea.vmem [#allocation8], %s928
        // Predicated region
        $region69: #{tpu_custom_call.1} parent=55 // pred_check
          %p930 = pneg %p239
        $region70: #{tpu_custom_call.1} parent=55 // pred_check_branch
          %932 = sbr.rel (%p930) target = $region72
        $region71: #{tpu_custom_call.1} parent=55 // pred_region
          %s934 = ssub.s32 384, 384
          %935 = vsyncadd %s926, %s934
          %s936 = smul.addr %s27, 3
          %s937 = smul.addr %s936, 128
          %s938 = scalar_lea.hbm %s9, %s937
          %s940 = sshll.u32 %s929, 4
          %s941 = int_to_ptr.vmem [resolvable:$true] %s940
          %943 = dma.vmem_to_hbm [thread:$0]  %s941, 384, %s938, %s926
        $region72: #{tpu_custom_call.1} parent=55 // pred_fallthru
          _
      $region56: #{tpu_custom_call.1} parent=5 // pred_fallthru
        _
      %p944 = scmp.le.s32.totalorder 2, %s22
      // Predicated region
      $region73: #{tpu_custom_call.1} parent=5 // pred_check
        %p945 = pneg %p944
      $region74: #{tpu_custom_call.1} parent=5 // pred_check_branch
        %947 = sbr.rel (%p945) target = $region76
      $region75: #{tpu_custom_call.1} parent=5 // pred_region
        %s948 = ssub.s32 %s22, 2
        // Predicated region
        $region77: #{tpu_custom_call.1} parent=75 // pred_check
          %p949 = pneg %p245
        $region78: #{tpu_custom_call.1} parent=75 // pred_check_branch
          %951 = sbr.rel (%p949) target = $region80
        $region79: #{tpu_custom_call.1} parent=75 // pred_region
          %s952 = sand.u32 %s230, 1
          %s953 = scalar_lea.sflag [#allocation4], %s952
          %s954 = sand.u32 %s230, 1
          %s955 = smul.addr %s954, 24
          %s956 = scalar_lea.vmem [#allocation8], %s955
          %957 = dma.done %s953, 384
        $region80: #{tpu_custom_call.1} parent=75 // pred_fallthru
          _
      $region76: #{tpu_custom_call.1} parent=5 // pred_fallthru
        _
    $region6: #{tpu_custom_call.1} parent=1 // loop_footer
      %s26 = sadd.s32 1, %s22
    $region7: #{tpu_custom_call.1} parent=1 // loop_footer_branch
      %21 = sbr.rel target = $region3
    $region8: #{tpu_custom_call.1} parent=1 // loop_exit
      _
    %958 = vsyncpa [#allocation3], 1
    %s959 = scalar_lea.sflag [#allocation3], 1
    %960 = vsyncpa %s959, 1
    %961 = vsyncpa [#allocation6], 1
    %962 = vsyncpa [#allocation4], 1
    %s963 = scalar_lea.sflag [#allocation4], 1
    %964 = vsyncpa %s963, 1

</llo_original>
